<compile_context>
chip_gen: v6e
topology: v6e:2x2x1
jax: 0.10.0
libtpu: 0.0.40
codegen_flags: <defaults>
</compile_context>

<pallas_src>
import jax
import jax.numpy as jnp
from jax.experimental import pallas as pl
from jax.experimental.pallas import tpu as pltpu


def lstm_kernel(x_ref, w_ih_ref, w_hh_ref, b_ref, h0_ref, c0_ref,
                w_out_ref, b_out_ref, out_ref):
    """Full-sequence LSTM recurrence + batched output projection, all in VMEM.

    x_ref     : (S, D_in)
    w_ih_ref  : (D_in, 4H)    (transposed weight_ih_l0)
    w_hh_ref  : (H, 4H)       (transposed weight_hh_l0)
    b_ref     : (1, 4H)       (b_ih + b_hh)
    h0_ref    : (1, H)
    c0_ref    : (1, H)
    w_out_ref : (H, D_pad)    (transposed hidden2out.weight, lane-padded)
    b_out_ref : (1, D_pad)    (lane-padded)
    out_ref   : (S, D_pad)
    """
    H = h0_ref.shape[1]
    S = x_ref.shape[0]

    # ---- hoisted input projection: one (S,4H) MXU matmul, off the serial path ----
    x_gates = (jnp.dot(x_ref[...], w_ih_ref[...],
                       preferred_element_type=jnp.float32)
               + b_ref[...])                                     # (S, 4H)

    w_hh = w_hh_ref[...]                                         # (H, 4H), loaded once
    h = h0_ref[...]                                              # (1, H)
    c = c0_ref[...]                                              # (1, H)

    # ---- fully unrolled recurrence (S is small & static): only h @ W_hh inside ----
    hs = []
    for t in range(S):
        gates = x_gates[t:t + 1, :] + jnp.dot(
            h, w_hh, preferred_element_type=jnp.float32)          # (1, 4H) = 1 vreg

        # Activate the full 128-lane gate vreg once on the EUP, then slice.
        sig = jax.nn.sigmoid(gates)
        th = jnp.tanh(gates)
        i_g = sig[:, 0:H]
        f_g = sig[:, H:2 * H]
        g_g = th[:, 2 * H:3 * H]
        o_g = sig[:, 3 * H:4 * H]

        c = f_g * c + i_g * g_g
        h = o_g * jnp.tanh(c)
        hs.append(h)

    # ---- batched output projection: one matmul + one lane-dense store ----
    h_all = jnp.concatenate(hs, axis=0)                           # (S, H)
    out_ref[...] = (jnp.dot(h_all, w_out_ref[...],
                            preferred_element_type=jnp.float32)
                    + b_out_ref[...])


def lstm_forward(x, w_ih_t, w_hh_t, b, h0, c0, w_out_t, b_out):
    S, _ = x.shape
    H = h0.shape[1]
    D_out = w_out_t.shape[1]

    # Pad the head to a lane-dense multiple of 128 so the single output store is
    # an unmasked vst; slice back to D_out outside the kernel.
    D_pad = max(128, ((D_out + 127) // 128) * 128)
    w_out_pad = jnp.zeros((H, D_pad), jnp.float32).at[:, :D_out].set(w_out_t)
    b_out_pad = jnp.zeros((1, D_pad), jnp.float32).at[:, :D_out].set(b_out)

    vmem = pl.BlockSpec(memory_space=pltpu.MemorySpace.VMEM)
    out_pad = pl.pallas_call(
        lstm_kernel,
        out_shape=jax.ShapeDtypeStruct((S, D_pad), jnp.float32),
        in_specs=[vmem] * 8,
        out_specs=vmem,
    )(x, w_ih_t, w_hh_t, b, h0, c0, w_out_pad, b_out_pad)
    return out_pad[:, :D_out]


def lstm_reference(x, w_ih_t, w_hh_t, b, h0, c0, w_out_t, b_out):
    """Pure-JAX reference matching torch.nn.LSTM semantics (gate order i,f,g,o)."""
    H = h0.shape[1]
    h = h0[0]
    c = c0[0]
    outs = []
    for t in range(x.shape[0]):
        gates = x[t] @ w_ih_t + h @ w_hh_t + b[0]
        i_g = jax.nn.sigmoid(gates[0:H])
        f_g = jax.nn.sigmoid(gates[H:2 * H])
        g_g = jnp.tanh(gates[2 * H:3 * H])
        o_g = jax.nn.sigmoid(gates[3 * H:4 * H])
        c = f_g * c + i_g * g_g
        h = o_g * jnp.tanh(c)
        outs.append(h @ w_out_t + b_out[0])
    return jnp.stack(outs, axis=0)


if __name__ == "__main__":
    seq_len, input_dim, hidden_dim, output_dim = 8, 16, 32, 8

    key = jax.random.PRNGKey(0)
    ks = jax.random.split(key, 9)
    k_bound = 1.0 / jnp.sqrt(hidden_dim)

    # nn.LSTM(input_dim, hidden_dim, 1) parameters  (PyTorch shapes, U(-1/sqrt(H), 1/sqrt(H)))
    w_ih = jax.random.uniform(ks[0], (4 * hidden_dim, input_dim),
                              jnp.float32, -k_bound, k_bound)
    w_hh = jax.random.uniform(ks[1], (4 * hidden_dim, hidden_dim),
                              jnp.float32, -k_bound, k_bound)
    b_ih = jax.random.uniform(ks[2], (4 * hidden_dim,), jnp.float32, -k_bound, k_bound)
    b_hh = jax.random.uniform(ks[3], (4 * hidden_dim,), jnp.float32, -k_bound, k_bound)

    # nn.Linear(hidden_dim, output_dim)
    w_out = jax.random.uniform(ks[4], (output_dim, hidden_dim),
                               jnp.float32, -k_bound, k_bound)
    b_out = jax.random.uniform(ks[5], (output_dim,), jnp.float32, -k_bound, k_bound)

    # init_hidden(): (h0, c0) = randn(1, 1, hidden_dim) each  (batch=1, squeezed)
    h0 = jax.random.normal(ks[6], (1, hidden_dim), jnp.float32)
    c0 = jax.random.normal(ks[7], (1, hidden_dim), jnp.float32)

    # input: (seq_len, batch=1, input_dim) -> batch squeezed
    x = jax.random.normal(ks[8], (seq_len, input_dim), jnp.float32)

    # Pre-transpose / pack weights for the kernel.
    w_ih_t = w_ih.T                      # (D_in, 4H)
    w_hh_t = w_hh.T                      # (H, 4H)
    b = (b_ih + b_hh)[None, :]           # (1, 4H)
    w_out_t = w_out.T                    # (H, D_out)
    b_out_2d = b_out[None, :]            # (1, D_out)

    out = lstm_forward(x, w_ih_t, w_hh_t, b, h0, c0, w_out_t, b_out_2d)
    out = jax.block_until_ready(out)

    ref = lstm_reference(x, w_ih_t, w_hh_t, b, h0, c0, w_out_t, b_out_2d)
    assert out.shape == (seq_len, output_dim)
    assert jnp.allclose(out, ref, atol=1e-5, rtol=1e-5)

    print("KERNEL_OK")
</pallas_src>

<mosaic_0001>
module attributes {stable_mosaic.version = 11 : i64} {
  func.func @lstm_kernel(%arg0: memref<8x16xf32, #tpu.memory_space<vmem>>, %arg1: memref<16x128xf32, #tpu.memory_space<vmem>>, %arg2: memref<32x128xf32, #tpu.memory_space<vmem>>, %arg3: memref<1x128xf32, #tpu.memory_space<vmem>>, %arg4: memref<1x32xf32, #tpu.memory_space<vmem>>, %arg5: memref<1x32xf32, #tpu.memory_space<vmem>>, %arg6: memref<32x128xf32, #tpu.memory_space<vmem>>, %arg7: memref<1x128xf32, #tpu.memory_space<vmem>>, %arg8: memref<8x128xf32, #tpu.memory_space<vmem>>) attributes {dimension_semantics = [], scalar_prefetch = 0 : i64, scratch_operands = 0 : i64, tpu.core_type = #tpu.core_type<tc>} {
    %c0 = arith.constant 0 : index
    %c0_0 = arith.constant 0 : index
    %0 = vector.load %arg0[%c0, %c0_0] : memref<8x16xf32, #tpu.memory_space<vmem>>, vector<8x16xf32>
    %c0_1 = arith.constant 0 : index
    %c0_2 = arith.constant 0 : index
    %1 = vector.load %arg1[%c0_1, %c0_2] : memref<16x128xf32, #tpu.memory_space<vmem>>, vector<16x128xf32>
    %cst = arith.constant dense<0.000000e+00> : vector<8x128xf32>
    %2 = tpu.matmul %0, %1, %cst {dimension_numbers = #tpu.dot_dimension_numbers<[1], [0], [0], [1], [0, 0, 1, 1], [], []>} : vector<8x16xf32>, vector<16x128xf32>, vector<8x128xf32> -> vector<8x128xf32>
    %c0_3 = arith.constant 0 : index
    %c0_4 = arith.constant 0 : index
    %3 = vector.load %arg3[%c0_3, %c0_4] : memref<1x128xf32, #tpu.memory_space<vmem>>, vector<1x128xf32>
    %4 = vector.broadcast %3 : vector<1x128xf32> to vector<8x128xf32>
    %5 = arith.addf %2, %4 : vector<8x128xf32>
    %c0_5 = arith.constant 0 : index
    %c0_6 = arith.constant 0 : index
    %6 = vector.load %arg2[%c0_5, %c0_6] : memref<32x128xf32, #tpu.memory_space<vmem>>, vector<32x128xf32>
    %c0_7 = arith.constant 0 : index
    %c0_8 = arith.constant 0 : index
    %7 = vector.load %arg4[%c0_7, %c0_8] : memref<1x32xf32, #tpu.memory_space<vmem>>, vector<1x32xf32>
    %c0_9 = arith.constant 0 : index
    %c0_10 = arith.constant 0 : index
    %8 = vector.load %arg5[%c0_9, %c0_10] : memref<1x32xf32, #tpu.memory_space<vmem>>, vector<1x32xf32>
    %9 = vector.extract_strided_slice %5 {offsets = [0, 0], sizes = [1, 128], strides = [1, 1]} : vector<8x128xf32> to vector<1x128xf32>
    %cst_11 = arith.constant dense<0.000000e+00> : vector<1x128xf32>
    %10 = tpu.matmul %7, %6, %cst_11 {dimension_numbers = #tpu.dot_dimension_numbers<[1], [0], [0], [1], [0, 0, 1, 1], [], []>} : vector<1x32xf32>, vector<32x128xf32>, vector<1x128xf32> -> vector<1x128xf32>
    %11 = arith.addf %9, %10 : vector<1x128xf32>
    %12 = arith.negf %11 : vector<1x128xf32>
    %13 = math.exp %12 : vector<1x128xf32>
    %cst_12 = arith.constant 1.000000e+00 : f32
    %14 = vector.broadcast %cst_12 : f32 to vector<1x128xf32>
    %15 = arith.addf %14, %13 : vector<1x128xf32>
    %16 = arith.divf %14, %15 : vector<1x128xf32>
    %17 = math.tanh %11 : vector<1x128xf32>
    %18 = vector.extract_strided_slice %16 {offsets = [0, 0], sizes = [1, 32], strides = [1, 1]} : vector<1x128xf32> to vector<1x32xf32>
    %19 = vector.extract_strided_slice %16 {offsets = [0, 32], sizes = [1, 32], strides = [1, 1]} : vector<1x128xf32> to vector<1x32xf32>
    %20 = vector.extract_strided_slice %17 {offsets = [0, 64], sizes = [1, 32], strides = [1, 1]} : vector<1x128xf32> to vector<1x32xf32>
    %21 = vector.extract_strided_slice %16 {offsets = [0, 96], sizes = [1, 32], strides = [1, 1]} : vector<1x128xf32> to vector<1x32xf32>
    %22 = arith.mulf %19, %8 : vector<1x32xf32>
    %23 = arith.mulf %18, %20 : vector<1x32xf32>
    %24 = arith.addf %22, %23 : vector<1x32xf32>
    %25 = math.tanh %24 : vector<1x32xf32>
    %26 = arith.mulf %21, %25 : vector<1x32xf32>
    %27 = vector.extract_strided_slice %5 {offsets = [1, 0], sizes = [1, 128], strides = [1, 1]} : vector<8x128xf32> to vector<1x128xf32>
    %cst_13 = arith.constant dense<0.000000e+00> : vector<1x128xf32>
    %28 = tpu.matmul %26, %6, %cst_13 {dimension_numbers = #tpu.dot_dimension_numbers<[1], [0], [0], [1], [0, 0, 1, 1], [], []>} : vector<1x32xf32>, vector<32x128xf32>, vector<1x128xf32> -> vector<1x128xf32>
    %29 = arith.addf %27, %28 : vector<1x128xf32>
    %30 = arith.negf %29 : vector<1x128xf32>
    %31 = math.exp %30 : vector<1x128xf32>
    %cst_14 = arith.constant 1.000000e+00 : f32
    %32 = vector.broadcast %cst_14 : f32 to vector<1x128xf32>
    %33 = arith.addf %32, %31 : vector<1x128xf32>
    %34 = arith.divf %32, %33 : vector<1x128xf32>
    %35 = math.tanh %29 : vector<1x128xf32>
    %36 = vector.extract_strided_slice %34 {offsets = [0, 0], sizes = [1, 32], strides = [1, 1]} : vector<1x128xf32> to vector<1x32xf32>
    %37 = vector.extract_strided_slice %34 {offsets = [0, 32], sizes = [1, 32], strides = [1, 1]} : vector<1x128xf32> to vector<1x32xf32>
    %38 = vector.extract_strided_slice %35 {offsets = [0, 64], sizes = [1, 32], strides = [1, 1]} : vector<1x128xf32> to vector<1x32xf32>
    %39 = vector.extract_strided_slice %34 {offsets = [0, 96], sizes = [1, 32], strides = [1, 1]} : vector<1x128xf32> to vector<1x32xf32>
    %40 = arith.mulf %37, %24 : vector<1x32xf32>
    %41 = arith.mulf %36, %38 : vector<1x32xf32>
    %42 = arith.addf %40, %41 : vector<1x32xf32>
    %43 = math.tanh %42 : vector<1x32xf32>
    %44 = arith.mulf %39, %43 : vector<1x32xf32>
    %45 = vector.extract_strided_slice %5 {offsets = [2, 0], sizes = [1, 128], strides = [1, 1]} : vector<8x128xf32> to vector<1x128xf32>
    %cst_15 = arith.constant dense<0.000000e+00> : vector<1x128xf32>
    %46 = tpu.matmul %44, %6, %cst_15 {dimension_numbers = #tpu.dot_dimension_numbers<[1], [0], [0], [1], [0, 0, 1, 1], [], []>} : vector<1x32xf32>, vector<32x128xf32>, vector<1x128xf32> -> vector<1x128xf32>
    %47 = arith.addf %45, %46 : vector<1x128xf32>
    %48 = arith.negf %47 : vector<1x128xf32>
    %49 = math.exp %48 : vector<1x128xf32>
    %cst_16 = arith.constant 1.000000e+00 : f32
    %50 = vector.broadcast %cst_16 : f32 to vector<1x128xf32>
    %51 = arith.addf %50, %49 : vector<1x128xf32>
    %52 = arith.divf %50, %51 : vector<1x128xf32>
    %53 = math.tanh %47 : vector<1x128xf32>
    %54 = vector.extract_strided_slice %52 {offsets = [0, 0], sizes = [1, 32], strides = [1, 1]} : vector<1x128xf32> to vector<1x32xf32>
    %55 = vector.extract_strided_slice %52 {offsets = [0, 32], sizes = [1, 32], strides = [1, 1]} : vector<1x128xf32> to vector<1x32xf32>
    %56 = vector.extract_strided_slice %53 {offsets = [0, 64], sizes = [1, 32], strides = [1, 1]} : vector<1x128xf32> to vector<1x32xf32>
    %57 = vector.extract_strided_slice %52 {offsets = [0, 96], sizes = [1, 32], strides = [1, 1]} : vector<1x128xf32> to vector<1x32xf32>
    %58 = arith.mulf %55, %42 : vector<1x32xf32>
    %59 = arith.mulf %54, %56 : vector<1x32xf32>
    %60 = arith.addf %58, %59 : vector<1x32xf32>
    %61 = math.tanh %60 : vector<1x32xf32>
    %62 = arith.mulf %57, %61 : vector<1x32xf32>
    %63 = vector.extract_strided_slice %5 {offsets = [3, 0], sizes = [1, 128], strides = [1, 1]} : vector<8x128xf32> to vector<1x128xf32>
    %cst_17 = arith.constant dense<0.000000e+00> : vector<1x128xf32>
    %64 = tpu.matmul %62, %6, %cst_17 {dimension_numbers = #tpu.dot_dimension_numbers<[1], [0], [0], [1], [0, 0, 1, 1], [], []>} : vector<1x32xf32>, vector<32x128xf32>, vector<1x128xf32> -> vector<1x128xf32>
    %65 = arith.addf %63, %64 : vector<1x128xf32>
    %66 = arith.negf %65 : vector<1x128xf32>
    %67 = math.exp %66 : vector<1x128xf32>
    %cst_18 = arith.constant 1.000000e+00 : f32
    %68 = vector.broadcast %cst_18 : f32 to vector<1x128xf32>
    %69 = arith.addf %68, %67 : vector<1x128xf32>
    %70 = arith.divf %68, %69 : vector<1x128xf32>
    %71 = math.tanh %65 : vector<1x128xf32>
    %72 = vector.extract_strided_slice %70 {offsets = [0, 0], sizes = [1, 32], strides = [1, 1]} : vector<1x128xf32> to vector<1x32xf32>
    %73 = vector.extract_strided_slice %70 {offsets = [0, 32], sizes = [1, 32], strides = [1, 1]} : vector<1x128xf32> to vector<1x32xf32>
    %74 = vector.extract_strided_slice %71 {offsets = [0, 64], sizes = [1, 32], strides = [1, 1]} : vector<1x128xf32> to vector<1x32xf32>
    %75 = vector.extract_strided_slice %70 {offsets = [0, 96], sizes = [1, 32], strides = [1, 1]} : vector<1x128xf32> to vector<1x32xf32>
    %76 = arith.mulf %73, %60 : vector<1x32xf32>
    %77 = arith.mulf %72, %74 : vector<1x32xf32>
    %78 = arith.addf %76, %77 : vector<1x32xf32>
    %79 = math.tanh %78 : vector<1x32xf32>
    %80 = arith.mulf %75, %79 : vector<1x32xf32>
    %81 = vector.extract_strided_slice %5 {offsets = [4, 0], sizes = [1, 128], strides = [1, 1]} : vector<8x128xf32> to vector<1x128xf32>
    %cst_19 = arith.constant dense<0.000000e+00> : vector<1x128xf32>
    %82 = tpu.matmul %80, %6, %cst_19 {dimension_numbers = #tpu.dot_dimension_numbers<[1], [0], [0], [1], [0, 0, 1, 1], [], []>} : vector<1x32xf32>, vector<32x128xf32>, vector<1x128xf32> -> vector<1x128xf32>
    %83 = arith.addf %81, %82 : vector<1x128xf32>
    %84 = arith.negf %83 : vector<1x128xf32>
    %85 = math.exp %84 : vector<1x128xf32>
    %cst_20 = arith.constant 1.000000e+00 : f32
    %86 = vector.broadcast %cst_20 : f32 to vector<1x128xf32>
    %87 = arith.addf %86, %85 : vector<1x128xf32>
    %88 = arith.divf %86, %87 : vector<1x128xf32>
    %89 = math.tanh %83 : vector<1x128xf32>
    %90 = vector.extract_strided_slice %88 {offsets = [0, 0], sizes = [1, 32], strides = [1, 1]} : vector<1x128xf32> to vector<1x32xf32>
    %91 = vector.extract_strided_slice %88 {offsets = [0, 32], sizes = [1, 32], strides = [1, 1]} : vector<1x128xf32> to vector<1x32xf32>
    %92 = vector.extract_strided_slice %89 {offsets = [0, 64], sizes = [1, 32], strides = [1, 1]} : vector<1x128xf32> to vector<1x32xf32>
    %93 = vector.extract_strided_slice %88 {offsets = [0, 96], sizes = [1, 32], strides = [1, 1]} : vector<1x128xf32> to vector<1x32xf32>
    %94 = arith.mulf %91, %78 : vector<1x32xf32>
    %95 = arith.mulf %90, %92 : vector<1x32xf32>
    %96 = arith.addf %94, %95 : vector<1x32xf32>
    %97 = math.tanh %96 : vector<1x32xf32>
    %98 = arith.mulf %93, %97 : vector<1x32xf32>
    %99 = vector.extract_strided_slice %5 {offsets = [5, 0], sizes = [1, 128], strides = [1, 1]} : vector<8x128xf32> to vector<1x128xf32>
    %cst_21 = arith.constant dense<0.000000e+00> : vector<1x128xf32>
    %100 = tpu.matmul %98, %6, %cst_21 {dimension_numbers = #tpu.dot_dimension_numbers<[1], [0], [0], [1], [0, 0, 1, 1], [], []>} : vector<1x32xf32>, vector<32x128xf32>, vector<1x128xf32> -> vector<1x128xf32>
    %101 = arith.addf %99, %100 : vector<1x128xf32>
    %102 = arith.negf %101 : vector<1x128xf32>
    %103 = math.exp %102 : vector<1x128xf32>
    %cst_22 = arith.constant 1.000000e+00 : f32
    %104 = vector.broadcast %cst_22 : f32 to vector<1x128xf32>
    %105 = arith.addf %104, %103 : vector<1x128xf32>
    %106 = arith.divf %104, %105 : vector<1x128xf32>
    %107 = math.tanh %101 : vector<1x128xf32>
    %108 = vector.extract_strided_slice %106 {offsets = [0, 0], sizes = [1, 32], strides = [1, 1]} : vector<1x128xf32> to vector<1x32xf32>
    %109 = vector.extract_strided_slice %106 {offsets = [0, 32], sizes = [1, 32], strides = [1, 1]} : vector<1x128xf32> to vector<1x32xf32>
    %110 = vector.extract_strided_slice %107 {offsets = [0, 64], sizes = [1, 32], strides = [1, 1]} : vector<1x128xf32> to vector<1x32xf32>
    %111 = vector.extract_strided_slice %106 {offsets = [0, 96], sizes = [1, 32], strides = [1, 1]} : vector<1x128xf32> to vector<1x32xf32>
    %112 = arith.mulf %109, %96 : vector<1x32xf32>
    %113 = arith.mulf %108, %110 : vector<1x32xf32>
    %114 = arith.addf %112, %113 : vector<1x32xf32>
    %115 = math.tanh %114 : vector<1x32xf32>
    %116 = arith.mulf %111, %115 : vector<1x32xf32>
    %117 = vector.extract_strided_slice %5 {offsets = [6, 0], sizes = [1, 128], strides = [1, 1]} : vector<8x128xf32> to vector<1x128xf32>
    %cst_23 = arith.constant dense<0.000000e+00> : vector<1x128xf32>
    %118 = tpu.matmul %116, %6, %cst_23 {dimension_numbers = #tpu.dot_dimension_numbers<[1], [0], [0], [1], [0, 0, 1, 1], [], []>} : vector<1x32xf32>, vector<32x128xf32>, vector<1x128xf32> -> vector<1x128xf32>
    %119 = arith.addf %117, %118 : vector<1x128xf32>
    %120 = arith.negf %119 : vector<1x128xf32>
    %121 = math.exp %120 : vector<1x128xf32>
    %cst_24 = arith.constant 1.000000e+00 : f32
    %122 = vector.broadcast %cst_24 : f32 to vector<1x128xf32>
    %123 = arith.addf %122, %121 : vector<1x128xf32>
    %124 = arith.divf %122, %123 : vector<1x128xf32>
    %125 = math.tanh %119 : vector<1x128xf32>
    %126 = vector.extract_strided_slice %124 {offsets = [0, 0], sizes = [1, 32], strides = [1, 1]} : vector<1x128xf32> to vector<1x32xf32>
    %127 = vector.extract_strided_slice %124 {offsets = [0, 32], sizes = [1, 32], strides = [1, 1]} : vector<1x128xf32> to vector<1x32xf32>
    %128 = vector.extract_strided_slice %125 {offsets = [0, 64], sizes = [1, 32], strides = [1, 1]} : vector<1x128xf32> to vector<1x32xf32>
    %129 = vector.extract_strided_slice %124 {offsets = [0, 96], sizes = [1, 32], strides = [1, 1]} : vector<1x128xf32> to vector<1x32xf32>
    %130 = arith.mulf %127, %114 : vector<1x32xf32>
    %131 = arith.mulf %126, %128 : vector<1x32xf32>
    %132 = arith.addf %130, %131 : vector<1x32xf32>
    %133 = math.tanh %132 : vector<1x32xf32>
    %134 = arith.mulf %129, %133 : vector<1x32xf32>
    %135 = vector.extract_strided_slice %5 {offsets = [7, 0], sizes = [1, 128], strides = [1, 1]} : vector<8x128xf32> to vector<1x128xf32>
    %cst_25 = arith.constant dense<0.000000e+00> : vector<1x128xf32>
    %136 = tpu.matmul %134, %6, %cst_25 {dimension_numbers = #tpu.dot_dimension_numbers<[1], [0], [0], [1], [0, 0, 1, 1], [], []>} : vector<1x32xf32>, vector<32x128xf32>, vector<1x128xf32> -> vector<1x128xf32>
    %137 = arith.addf %135, %136 : vector<1x128xf32>
    %138 = arith.negf %137 : vector<1x128xf32>
    %139 = math.exp %138 : vector<1x128xf32>
    %cst_26 = arith.constant 1.000000e+00 : f32
    %140 = vector.broadcast %cst_26 : f32 to vector<1x128xf32>
    %141 = arith.addf %140, %139 : vector<1x128xf32>
    %142 = arith.divf %140, %141 : vector<1x128xf32>
    %143 = math.tanh %137 : vector<1x128xf32>
    %144 = vector.extract_strided_slice %142 {offsets = [0, 0], sizes = [1, 32], strides = [1, 1]} : vector<1x128xf32> to vector<1x32xf32>
    %145 = vector.extract_strided_slice %142 {offsets = [0, 32], sizes = [1, 32], strides = [1, 1]} : vector<1x128xf32> to vector<1x32xf32>
    %146 = vector.extract_strided_slice %143 {offsets = [0, 64], sizes = [1, 32], strides = [1, 1]} : vector<1x128xf32> to vector<1x32xf32>
    %147 = vector.extract_strided_slice %142 {offsets = [0, 96], sizes = [1, 32], strides = [1, 1]} : vector<1x128xf32> to vector<1x32xf32>
    %148 = arith.mulf %145, %132 : vector<1x32xf32>
    %149 = arith.mulf %144, %146 : vector<1x32xf32>
    %150 = arith.addf %148, %149 : vector<1x32xf32>
    %151 = math.tanh %150 : vector<1x32xf32>
    %152 = arith.mulf %147, %151 : vector<1x32xf32>
    %153 = tpu.concatenate %26, %44, %62, %80, %98, %116, %134, %152 in 0 : vector<1x32xf32>, vector<1x32xf32>, vector<1x32xf32>, vector<1x32xf32>, vector<1x32xf32>, vector<1x32xf32>, vector<1x32xf32>, vector<1x32xf32> -> vector<8x32xf32>
    %c0_27 = arith.constant 0 : index
    %c0_28 = arith.constant 0 : index
    %154 = vector.load %arg6[%c0_27, %c0_28] : memref<32x128xf32, #tpu.memory_space<vmem>>, vector<32x128xf32>
    %cst_29 = arith.constant dense<0.000000e+00> : vector<8x128xf32>
    %155 = tpu.matmul %153, %154, %cst_29 {dimension_numbers = #tpu.dot_dimension_numbers<[1], [0], [0], [1], [0, 0, 1, 1], [], []>} : vector<8x32xf32>, vector<32x128xf32>, vector<8x128xf32> -> vector<8x128xf32>
    %c0_30 = arith.constant 0 : index
    %c0_31 = arith.constant 0 : index
    %156 = vector.load %arg7[%c0_30, %c0_31] : memref<1x128xf32, #tpu.memory_space<vmem>>, vector<1x128xf32>
    %157 = vector.broadcast %156 : vector<1x128xf32> to vector<8x128xf32>
    %158 = arith.addf %155, %157 : vector<8x128xf32>
    %c0_32 = arith.constant 0 : index
    %c0_33 = arith.constant 0 : index
    %159 = vector.load %arg8[%c0_32, %c0_33] : memref<8x128xf32, #tpu.memory_space<vmem>>, vector<8x128xf32>
    tpu.vector_store %arg8[%c0_32, %c0_33], %158 {strides = array<i32>} : memref<8x128xf32, #tpu.memory_space<vmem>>, vector<8x128xf32>,
    return
  }
}

</mosaic_0001>

<llo_original>
// kernel: tpu_custom_call.1
$region0: #{tpu_custom_call.1}
  #allocation0 [shape = 'u32[]', space=smem, size = 0x4, offset = 0x4, fixed_abs, tag = 'smem constant byte address 0x4 - core index']
  #allocation1 [shape = 'u32[144,128]{1,0:T(1,128)}', space=vmem, size = 0x12000, scoped, tag = 'internal scratch']
  %s0 = inlined_call_operand.hbm [shape: f32[8,16], index: 0, kind: input, shape index: {}]
  %s1 = inlined_call_operand.hbm [shape: f32[16,128], index: 1, kind: input, shape index: {}]
  %s2 = inlined_call_operand.hbm [shape: f32[32,128], index: 2, kind: input, shape index: {}]
  %s3 = inlined_call_operand.vmem [shape: f32[1,128], index: 3, kind: input, shape index: {}]
  %s4 = inlined_call_operand.vmem [shape: f32[1,32], index: 4, kind: input, shape index: {}]
  %s5 = inlined_call_operand.vmem [shape: f32[1,32], index: 5, kind: input, shape index: {}]
  %s6 = inlined_call_operand.hbm [shape: f32[32,128], index: 6, kind: input, shape index: {}]
  %s7 = inlined_call_operand.vmem [shape: f32[1,128], index: 7, kind: input, shape index: {}]
  %s8 = inlined_call_operand.hbm [shape: f32[8,128], index: 8, kind: output, shape index: {}]
  %s9 = sld [smem:[#allocation0]]
  $region58: #{tpu_custom_call.1} parent=0
    _
  %s11 = ssub.s32 1, %s9
  %s12 = scalar_select 0, %s11, %s9
  $region1: #{tpu_custom_call.1} parent=0
    #allocation2 [shape = 'u8[4096]{0}', space=vmem, size = 0x1000, scoped, tag = 'input window, operand 0, single buffered']
    #allocation3 [shape = 's32[1]{0}', space=sflag, size = 0x4, scoped, tag = 'scoped memory for tpu_custom_call.1']
    #allocation4 [shape = 's32[1]{0}', space=sflag, size = 0x4, scoped, tag = 'scoped memory for tpu_custom_call.1']
    #allocation5 [shape = 'u8[8192]{0}', space=vmem, size = 0x2000, scoped, tag = 'input window, operand 1, single buffered']
    #allocation6 [shape = 's32[1]{0}', space=sflag, size = 0x4, scoped, tag = 'scoped memory for tpu_custom_call.1']
    #allocation7 [shape = 'u8[16384]{0}', space=vmem, size = 0x4000, scoped, tag = 'input window, operand 2, single buffered']
    #allocation8 [shape = 'u8[16384]{0}', space=vmem, size = 0x4000, scoped, tag = 'input window, operand 6, single buffered']
    #allocation9 [shape = 's32[1]{0}', space=sflag, size = 0x4, scoped, tag = 'scoped memory for tpu_custom_call.1']
    #allocation10 [shape = 'u8[4096]{0}', space=vmem, size = 0x1000, scoped, tag = 'output window, operand 0, single buffered']
    %13 = vsyncpa [#allocation3], 0
    %14 = vsyncpa [#allocation6], 0
    %15 = vsyncpa [#allocation9], 0
    %16 = vsyncpa [#allocation4], 0
    // Predicated region
    $region2: #{tpu_custom_call.1} parent=1 // pred_check
      _
    $region3: #{tpu_custom_call.1} parent=1 // pred_check_branch
      %18 = sbr.rel (0) target = $region5
    $region4: #{tpu_custom_call.1} parent=1 // pred_region
      %s20 = ssub.s32 128, 128
      %21 = vsyncadd [#allocation3], %s20
      %s23 = sshll.u32 [#allocation2], 4
      %s24 = int_to_ptr.vmem [resolvable:$true] %s23
      %26 = dma.hbm_to_vmem [thread:$0]  %s0, 128, %s24, [#allocation3]
    $region5: #{tpu_custom_call.1} parent=1 // pred_fallthru
      _
    // Predicated region
    $region6: #{tpu_custom_call.1} parent=1 // pred_check
      _
    $region7: #{tpu_custom_call.1} parent=1 // pred_check_branch
      %28 = sbr.rel (0) target = $region9
    $region8: #{tpu_custom_call.1} parent=1 // pred_region
      %s30 = ssub.s32 256, 256
      %31 = vsyncadd [#allocation6], %s30
      %s32 = sshll.u32 [#allocation5], 4
      %s33 = int_to_ptr.vmem [resolvable:$true] %s32
      %38 = dma.hbm_to_vmem [thread:$0]  %s1, 256, %s33, [#allocation6], 128, 128, 8
    $region9: #{tpu_custom_call.1} parent=1 // pred_fallthru
      _
    // Predicated region
    $region10: #{tpu_custom_call.1} parent=1 // pred_check
      _
    $region11: #{tpu_custom_call.1} parent=1 // pred_check_branch
      %40 = sbr.rel (0) target = $region13
    $region12: #{tpu_custom_call.1} parent=1 // pred_region
      %s42 = ssub.s32 512, 512
      %43 = vsyncadd [#allocation6], %s42
      %s44 = sshll.u32 [#allocation7], 4
      %s45 = int_to_ptr.vmem [resolvable:$true] %s44
      %50 = dma.hbm_to_vmem [thread:$0]  %s2, 512, %s45, [#allocation6], 128, 128, 8
    $region13: #{tpu_custom_call.1} parent=1 // pred_fallthru
      _
    // Predicated region
    $region14: #{tpu_custom_call.1} parent=1 // pred_check
      _
    $region15: #{tpu_custom_call.1} parent=1 // pred_check_branch
      %52 = sbr.rel (0) target = $region17
    $region16: #{tpu_custom_call.1} parent=1 // pred_region
      _
    $region17: #{tpu_custom_call.1} parent=1 // pred_fallthru
      _
    // Predicated region
    $region18: #{tpu_custom_call.1} parent=1 // pred_check
      _
    $region19: #{tpu_custom_call.1} parent=1 // pred_check_branch
      %54 = sbr.rel (0) target = $region21
    $region20: #{tpu_custom_call.1} parent=1 // pred_region
      _
    $region21: #{tpu_custom_call.1} parent=1 // pred_fallthru
      _
    // Predicated region
    $region22: #{tpu_custom_call.1} parent=1 // pred_check
      _
    $region23: #{tpu_custom_call.1} parent=1 // pred_check_branch
      %56 = sbr.rel (0) target = $region25
    $region24: #{tpu_custom_call.1} parent=1 // pred_region
      _
    $region25: #{tpu_custom_call.1} parent=1 // pred_fallthru
      _
    // Predicated region
    $region26: #{tpu_custom_call.1} parent=1 // pred_check
      _
    $region27: #{tpu_custom_call.1} parent=1 // pred_check_branch
      %58 = sbr.rel (0) target = $region29
    $region28: #{tpu_custom_call.1} parent=1 // pred_region
      %s60 = ssub.s32 512, 512
      %61 = vsyncadd [#allocation9], %s60
      %s62 = sshll.u32 [#allocation8], 4
      %s63 = int_to_ptr.vmem [resolvable:$true] %s62
      %68 = dma.hbm_to_vmem [thread:$0]  %s6, 512, %s63, [#allocation9], 128, 128, 8
    $region29: #{tpu_custom_call.1} parent=1 // pred_fallthru
      _
    // Predicated region
    $region30: #{tpu_custom_call.1} parent=1 // pred_check
      _
    $region31: #{tpu_custom_call.1} parent=1 // pred_check_branch
      %70 = sbr.rel (0) target = $region33
    $region32: #{tpu_custom_call.1} parent=1 // pred_region
      _
    $region33: #{tpu_custom_call.1} parent=1 // pred_fallthru
      _
    // Predicated region
    $region34: #{tpu_custom_call.1} parent=1 // pred_check
      _
    $region35: #{tpu_custom_call.1} parent=1 // pred_check_branch
      %72 = sbr.rel (0) target = $region37
    $region36: #{tpu_custom_call.1} parent=1 // pred_region
      %73 = dma.done [#allocation3], 128
    $region37: #{tpu_custom_call.1} parent=1 // pred_fallthru
      _
    // Predicated region
    $region38: #{tpu_custom_call.1} parent=1 // pred_check
      _
    $region39: #{tpu_custom_call.1} parent=1 // pred_check_branch
      %75 = sbr.rel (0) target = $region41
    $region40: #{tpu_custom_call.1} parent=1 // pred_region
      %76 = dma.done [#allocation6], 256
    $region41: #{tpu_custom_call.1} parent=1 // pred_fallthru
      _
    // Predicated region
    $region42: #{tpu_custom_call.1} parent=1 // pred_check
      _
    $region43: #{tpu_custom_call.1} parent=1 // pred_check_branch
      %78 = sbr.rel (0) target = $region45
    $region44: #{tpu_custom_call.1} parent=1 // pred_region
      %79 = dma.done [#allocation6], 512
    $region45: #{tpu_custom_call.1} parent=1 // pred_fallthru
      _
    // Predicated region
    $region46: #{tpu_custom_call.1} parent=1 // pred_check
      _
    $region47: #{tpu_custom_call.1} parent=1 // pred_check_branch
      %81 = sbr.rel (0) target = $region49
    $region48: #{tpu_custom_call.1} parent=1 // pred_region
      %82 = dma.done [#allocation9], 512
    $region49: #{tpu_custom_call.1} parent=1 // pred_fallthru
      _
    %v83 = vld [vmem:[#allocation2] sm:$0xff]
    %v84 = vld [vmem:[#allocation5] sm:$0xff]
    %v85 = vld [vmem:[#allocation5 + $0x8] sm:$0xff]
    %v86 = vld [vmem:[%s3] sm:$0x1]
    %v88 = vlaneseq
    %v89 = vshrl.u32 %v88, 7
    %v90 = vsub.s32 0, %v89
    %v91 = vrot.slane %v86, %v90
    %vm93 = vcmask 130048
    %v95 = vsel %vm93, %v83, 0
    %97 = vmatprep.subr.mxu0 0.0
    %98 = vmatpush1.msra.mxu0 0.0
    %99 = vmatprep.subr.mxu0 0.0
    %100 = vmatpush1.msra.mxu0 0.0
    %101 = vmatprep.subr.mxu0 0.0
    %102 = vmatpush1.msra.mxu0 0.0
    %103 = vmatprep.subr.mxu0 0.0
    %104 = vmatpush1.msra.mxu0 0.0
    %105 = vmatprep.subr.mxu0 0.0
    %106 = vmatpush1.msra.mxu0 0.0
    %107 = vmatprep.subr.mxu0 0.0
    %108 = vmatpush1.msra.mxu0 0.0
    %109 = vmatprep.subr.mxu0 0.0
    %110 = vmatpush1.msra.mxu0 0.0
    %111 = vmatprep.subr.mxu0 0.0
    %112 = vmatpush1.msra.mxu0 0.0
    %113 = vmatprep.subr.mxu0 0.0
    %114 = vmatpush1.msra.mxu0 0.0
    %115 = vmatprep.subr.mxu0 0.0
    %116 = vmatpush1.msra.mxu0 0.0
    %117 = vmatprep.subr.mxu0 0.0
    %118 = vmatpush1.msra.mxu0 0.0
    %119 = vmatprep.subr.mxu0 0.0
    %120 = vmatpush1.msra.mxu0 0.0
    %121 = vmatprep.subr.mxu0 0.0
    %122 = vmatpush1.msra.mxu0 0.0
    %123 = vmatprep.subr.mxu0 0.0
    %124 = vmatpush1.msra.mxu0 0.0
    %125 = vmatprep.subr.mxu0 0.0
    %126 = vmatpush1.msra.mxu0 %v85
    %127 = vmatprep.subr.mxu0 0.0
    %128 = vmatpush1.msra.mxu0 %v84
    %129 = vmatprep.subr.mxu0 0.0
    %130 = vmatpush2.msra.mxu0 0.0
    %131 = vmatprep.subr.mxu0 0.0
    %132 = vmatpush2.msra.mxu0 0.0
    %133 = vmatprep.subr.mxu0 0.0
    %134 = vmatpush2.msra.mxu0 0.0
    %135 = vmatprep.subr.mxu0 0.0
    %136 = vmatpush2.msra.mxu0 0.0
    %137 = vmatprep.subr.mxu0 0.0
    %138 = vmatpush2.msra.mxu0 0.0
    %139 = vmatprep.subr.mxu0 0.0
    %140 = vmatpush2.msra.mxu0 0.0
    %141 = vmatprep.subr.mxu0 0.0
    %142 = vmatpush2.msra.mxu0 0.0
    %143 = vmatprep.subr.mxu0 0.0
    %144 = vmatpush2.msra.mxu0 0.0
    %145 = vmatprep.subr.mxu0 0.0
    %146 = vmatpush2.msra.mxu0 0.0
    %147 = vmatprep.subr.mxu0 0.0
    %148 = vmatpush2.msra.mxu0 0.0
    %149 = vmatprep.subr.mxu0 0.0
    %150 = vmatpush2.msra.mxu0 0.0
    %151 = vmatprep.subr.mxu0 0.0
    %152 = vmatpush2.msra.mxu0 0.0
    %153 = vmatprep.subr.mxu0 0.0
    %154 = vmatpush2.msra.mxu0 0.0
    %155 = vmatprep.subr.mxu0 0.0
    %156 = vmatpush2.msra.mxu0 0.0
    %157 = vmatprep.subr.mxu0 0.0
    %158 = vmatpush2.msra.mxu0 0.0
    %159 = vmatprep.subr.mxu0 0.0
    %160 = vmatpush2.msra.mxu0 0.0
    %161 = vmatprep.mubr.f32.mxu0 0.0
    %162 = vmatmul.mubr.f32.gmra.mxu0 %v95
    %v163 = vpop.f32.mrf.mxu0
    %v164 = vadd.f32 %v91, %v163
    %v165 = vpop.f32.mrf.mxu0
    %166 = vdwg.mxu0
    %v167 = vld [vmem:[#allocation7] sm:$0xff]
    %v168 = vld [vmem:[#allocation7 + $0x8] sm:$0xff]
    %v169 = vld [vmem:[#allocation7 + $0x10] sm:$0xff]
    %v170 = vld [vmem:[#allocation7 + $0x18] sm:$0xff]
    %v171 = vld [vmem:[%s4] sm:$0x1]
    %v172 = vld [vmem:[%s5] sm:$0x1]
    %vm173 = vcmask 261120
    %v175 = vsel %vm173, %v171, 0
    %177 = vmatprep.subr.mxu0 0.0
    %178 = vmatpush1.msra.mxu0 0.0
    %179 = vmatprep.subr.mxu0 0.0
    %180 = vmatpush1.msra.mxu0 0.0
    %181 = vmatprep.subr.mxu0 0.0
    %182 = vmatpush1.msra.mxu0 0.0
    %183 = vmatprep.subr.mxu0 0.0
    %184 = vmatpush1.msra.mxu0 0.0
    %185 = vmatprep.subr.mxu0 0.0
    %186 = vmatpush1.msra.mxu0 0.0
    %187 = vmatprep.subr.mxu0 0.0
    %188 = vmatpush1.msra.mxu0 0.0
    %189 = vmatprep.subr.mxu0 0.0
    %190 = vmatpush1.msra.mxu0 0.0
    %191 = vmatprep.subr.mxu0 0.0
    %192 = vmatpush1.msra.mxu0 0.0
    %193 = vmatprep.subr.mxu0 0.0
    %194 = vmatpush1.msra.mxu0 0.0
    %195 = vmatprep.subr.mxu0 0.0
    %196 = vmatpush1.msra.mxu0 0.0
    %197 = vmatprep.subr.mxu0 0.0
    %198 = vmatpush1.msra.mxu0 0.0
    %199 = vmatprep.subr.mxu0 0.0
    %200 = vmatpush1.msra.mxu0 0.0
    %201 = vmatprep.subr.mxu0 0.0
    %202 = vmatpush1.msra.mxu0 %v170
    %203 = vmatprep.subr.mxu0 0.0
    %204 = vmatpush1.msra.mxu0 %v169
    %205 = vmatprep.subr.mxu0 0.0
    %206 = vmatpush1.msra.mxu0 %v168
    %207 = vmatprep.subr.mxu0 0.0
    %208 = vmatpush1.msra.mxu0 %v167
    %209 = vmatprep.subr.mxu0 0.0
    %210 = vmatpush2.msra.mxu0 0.0
    %211 = vmatprep.subr.mxu0 0.0
    %212 = vmatpush2.msra.mxu0 0.0
    %213 = vmatprep.subr.mxu0 0.0
    %214 = vmatpush2.msra.mxu0 0.0
    %215 = vmatprep.subr.mxu0 0.0
    %216 = vmatpush2.msra.mxu0 0.0
    %217 = vmatprep.subr.mxu0 0.0
    %218 = vmatpush2.msra.mxu0 0.0
    %219 = vmatprep.subr.mxu0 0.0
    %220 = vmatpush2.msra.mxu0 0.0
    %221 = vmatprep.subr.mxu0 0.0
    %222 = vmatpush2.msra.mxu0 0.0
    %223 = vmatprep.subr.mxu0 0.0
    %224 = vmatpush2.msra.mxu0 0.0
    %225 = vmatprep.subr.mxu0 0.0
    %226 = vmatpush2.msra.mxu0 0.0
    %227 = vmatprep.subr.mxu0 0.0
    %228 = vmatpush2.msra.mxu0 0.0
    %229 = vmatprep.subr.mxu0 0.0
    %230 = vmatpush2.msra.mxu0 0.0
    %231 = vmatprep.subr.mxu0 0.0
    %232 = vmatpush2.msra.mxu0 0.0
    %233 = vmatprep.subr.mxu0 0.0
    %234 = vmatpush2.msra.mxu0 0.0
    %235 = vmatprep.subr.mxu0 0.0
    %236 = vmatpush2.msra.mxu0 0.0
    %237 = vmatprep.subr.mxu0 0.0
    %238 = vmatpush2.msra.mxu0 0.0
    %239 = vmatprep.subr.mxu0 0.0
    %240 = vmatpush2.msra.mxu0 0.0
    %241 = vmatprep.mubr.f32.mxu0 0.0
    %242 = vmatmul.mubr.f32.gmra.mxu0 %v175
    %v243 = vpop.f32.mrf.mxu0
    %v244 = vadd.f32 0.0, %v243
    %v245 = vpop.f32.mrf.mxu0
    %246 = vdwg.mxu0
    %v247 = vadd.f32 %v164, %v244
    %v248 = vxor.u32 %v247, 2147483648
    %v249 = vmul.f32 %v248, 1.442695
    %v250 = vpow.pop %v249
    %v251 = vadd.f32 %v250, 1.0
    %v252 = vrcp.pop %v251
    %v253 = vmul.f32 1.0, %v252
    %v254 = vtanh.pop %v247
    %v256 = vlaneseq
    %v257 = vshrl.u32 %v256, 7
    %v258 = vsub.s32 0, %v257
    %v259 = vrot.slane %v172, %v258
    %260 = vrot.lane.b32.xlu0 %v259, 32
    %v261 = vpop.permute.xlu0 %260
    %v263 = vmul.f32 %v253, %v261
    %265 = vrot.lane.b32.xlu0 %v254, 64
    %v266 = vpop.permute.xlu0 %265
    %v268 = vmul.f32 %v253, %v266
    %270 = vrot.lane.b32.xlu0 %v268, 32
    %v271 = vpop.permute.xlu0 %270
    %v273 = vadd.f32 %v263, %v271
    %v274 = vtanh.pop %v273
    %276 = vrot.lane.b32.xlu0 %v274, 64
    %v277 = vpop.permute.xlu0 %276
    %v279 = vmul.f32 %v253, %v277
    %281 = vrot.lane.b32.xlu0 %v279, 32
    %v282 = vpop.permute.xlu0 %281
    %v283 = vsel %vm173, %v282, 0
    %285 = vmatprep.subr.mxu0 0.0
    %286 = vmatpush1.msra.mxu0 0.0
    %287 = vmatprep.subr.mxu0 0.0
    %288 = vmatpush1.msra.mxu0 0.0
    %289 = vmatprep.subr.mxu0 0.0
    %290 = vmatpush1.msra.mxu0 0.0
    %291 = vmatprep.subr.mxu0 0.0
    %292 = vmatpush1.msra.mxu0 0.0
    %293 = vmatprep.subr.mxu0 0.0
    %294 = vmatpush1.msra.mxu0 0.0
    %295 = vmatprep.subr.mxu0 0.0
    %296 = vmatpush1.msra.mxu0 0.0
    %297 = vmatprep.subr.mxu0 0.0
    %298 = vmatpush1.msra.mxu0 0.0
    %299 = vmatprep.subr.mxu0 0.0
    %300 = vmatpush1.msra.mxu0 0.0
    %301 = vmatprep.subr.mxu0 0.0
    %302 = vmatpush1.msra.mxu0 0.0
    %303 = vmatprep.subr.mxu0 0.0
    %304 = vmatpush1.msra.mxu0 0.0
    %305 = vmatprep.subr.mxu0 0.0
    %306 = vmatpush1.msra.mxu0 0.0
    %307 = vmatprep.subr.mxu0 0.0
    %308 = vmatpush1.msra.mxu0 0.0
    %309 = vmatprep.subr.mxu0 0.0
    %310 = vmatpush1.msra.mxu0 %v170
    %311 = vmatprep.subr.mxu0 0.0
    %312 = vmatpush1.msra.mxu0 %v169
    %313 = vmatprep.subr.mxu0 0.0
    %314 = vmatpush1.msra.mxu0 %v168
    %315 = vmatprep.subr.mxu0 0.0
    %316 = vmatpush1.msra.mxu0 %v167
    %317 = vmatprep.subr.mxu0 0.0
    %318 = vmatpush2.msra.mxu0 0.0
    %319 = vmatprep.subr.mxu0 0.0
    %320 = vmatpush2.msra.mxu0 0.0
    %321 = vmatprep.subr.mxu0 0.0
    %322 = vmatpush2.msra.mxu0 0.0
    %323 = vmatprep.subr.mxu0 0.0
    %324 = vmatpush2.msra.mxu0 0.0
    %325 = vmatprep.subr.mxu0 0.0
    %326 = vmatpush2.msra.mxu0 0.0
    %327 = vmatprep.subr.mxu0 0.0
    %328 = vmatpush2.msra.mxu0 0.0
    %329 = vmatprep.subr.mxu0 0.0
    %330 = vmatpush2.msra.mxu0 0.0
    %331 = vmatprep.subr.mxu0 0.0
    %332 = vmatpush2.msra.mxu0 0.0
    %333 = vmatprep.subr.mxu0 0.0
    %334 = vmatpush2.msra.mxu0 0.0
    %335 = vmatprep.subr.mxu0 0.0
    %336 = vmatpush2.msra.mxu0 0.0
    %337 = vmatprep.subr.mxu0 0.0
    %338 = vmatpush2.msra.mxu0 0.0
    %339 = vmatprep.subr.mxu0 0.0
    %340 = vmatpush2.msra.mxu0 0.0
    %341 = vmatprep.subr.mxu0 0.0
    %342 = vmatpush2.msra.mxu0 0.0
    %343 = vmatprep.subr.mxu0 0.0
    %344 = vmatpush2.msra.mxu0 0.0
    %345 = vmatprep.subr.mxu0 0.0
    %346 = vmatpush2.msra.mxu0 0.0
    %347 = vmatprep.subr.mxu0 0.0
    %348 = vmatpush2.msra.mxu0 0.0
    %349 = vmatprep.mubr.f32.mxu0 0.0
    %350 = vmatmul.mubr.f32.gmra.mxu0 %v283
    %v351 = vpop.f32.mrf.mxu0
    %v352 = vadd.f32 0.0, %v351
    %v353 = vpop.f32.mrf.mxu0
    %354 = vdwg.mxu0
    %v356 = vrot.slane %v352, 7
    %v358 = vadd.f32 %v164, %v356
    %v359 = vxor.u32 %v358, 2147483648
    %v360 = vmul.f32 %v359, 1.442695
    %v361 = vpow.pop %v360
    %v362 = vadd.f32 %v361, 1.0
    %v363 = vrcp.pop %v362
    %v364 = vmul.f32 1.0, %v363
    %v365 = vtanh.pop %v358
    %v367 = vrot.slane %v273, 7
    %v369 = vmul.f32 %v364, %v367
    %371 = vrot.lane.b32.xlu0 %v365, 64
    %v372 = vpop.permute.xlu0 %371
    %v374 = vmul.f32 %v364, %v372
    %376 = vrot.lane.b32.xlu0 %v374, 32
    %v377 = vpop.permute.xlu0 %376
    %v379 = vadd.f32 %v369, %v377
    %v380 = vtanh.pop %v379
    %382 = vrot.lane.b32.xlu0 %v380, 64
    %v383 = vpop.permute.xlu0 %382
    %v385 = vmul.f32 %v364, %v383
    %v387 = vrot.slane %v385, 1
    %388 = vrot.lane.b32.xlu0 %v387, 32
    %v389 = vpop.permute.xlu0 %388
    %v390 = vsel %vm173, %v389, 0
    %392 = vmatprep.subr.mxu0 0.0
    %393 = vmatpush1.msra.mxu0 0.0
    %394 = vmatprep.subr.mxu0 0.0
    %395 = vmatpush1.msra.mxu0 0.0
    %396 = vmatprep.subr.mxu0 0.0
    %397 = vmatpush1.msra.mxu0 0.0
    %398 = vmatprep.subr.mxu0 0.0
    %399 = vmatpush1.msra.mxu0 0.0
    %400 = vmatprep.subr.mxu0 0.0
    %401 = vmatpush1.msra.mxu0 0.0
    %402 = vmatprep.subr.mxu0 0.0
    %403 = vmatpush1.msra.mxu0 0.0
    %404 = vmatprep.subr.mxu0 0.0
    %405 = vmatpush1.msra.mxu0 0.0
    %406 = vmatprep.subr.mxu0 0.0
    %407 = vmatpush1.msra.mxu0 0.0
    %408 = vmatprep.subr.mxu0 0.0
    %409 = vmatpush1.msra.mxu0 0.0
    %410 = vmatprep.subr.mxu0 0.0
    %411 = vmatpush1.msra.mxu0 0.0
    %412 = vmatprep.subr.mxu0 0.0
    %413 = vmatpush1.msra.mxu0 0.0
    %414 = vmatprep.subr.mxu0 0.0
    %415 = vmatpush1.msra.mxu0 0.0
    %416 = vmatprep.subr.mxu0 0.0
    %417 = vmatpush1.msra.mxu0 %v170
    %418 = vmatprep.subr.mxu0 0.0
    %419 = vmatpush1.msra.mxu0 %v169
    %420 = vmatprep.subr.mxu0 0.0
    %421 = vmatpush1.msra.mxu0 %v168
    %422 = vmatprep.subr.mxu0 0.0
    %423 = vmatpush1.msra.mxu0 %v167
    %424 = vmatprep.subr.mxu0 0.0
    %425 = vmatpush2.msra.mxu0 0.0
    %426 = vmatprep.subr.mxu0 0.0
    %427 = vmatpush2.msra.mxu0 0.0
    %428 = vmatprep.subr.mxu0 0.0
    %429 = vmatpush2.msra.mxu0 0.0
    %430 = vmatprep.subr.mxu0 0.0
    %431 = vmatpush2.msra.mxu0 0.0
    %432 = vmatprep.subr.mxu0 0.0
    %433 = vmatpush2.msra.mxu0 0.0
    %434 = vmatprep.subr.mxu0 0.0
    %435 = vmatpush2.msra.mxu0 0.0
    %436 = vmatprep.subr.mxu0 0.0
    %437 = vmatpush2.msra.mxu0 0.0
    %438 = vmatprep.subr.mxu0 0.0
    %439 = vmatpush2.msra.mxu0 0.0
    %440 = vmatprep.subr.mxu0 0.0
    %441 = vmatpush2.msra.mxu0 0.0
    %442 = vmatprep.subr.mxu0 0.0
    %443 = vmatpush2.msra.mxu0 0.0
    %444 = vmatprep.subr.mxu0 0.0
    %445 = vmatpush2.msra.mxu0 0.0
    %446 = vmatprep.subr.mxu0 0.0
    %447 = vmatpush2.msra.mxu0 0.0
    %448 = vmatprep.subr.mxu0 0.0
    %449 = vmatpush2.msra.mxu0 0.0
    %450 = vmatprep.subr.mxu0 0.0
    %451 = vmatpush2.msra.mxu0 0.0
    %452 = vmatprep.subr.mxu0 0.0
    %453 = vmatpush2.msra.mxu0 0.0
    %454 = vmatprep.subr.mxu0 0.0
    %455 = vmatpush2.msra.mxu0 0.0
    %456 = vmatprep.mubr.f32.mxu0 0.0
    %457 = vmatmul.mubr.f32.gmra.mxu0 %v390
    %v458 = vpop.f32.mrf.mxu0
    %v459 = vadd.f32 0.0, %v458
    %v460 = vpop.f32.mrf.mxu0
    %461 = vdwg.mxu0
    %v463 = vrot.slane %v459, 6
    %v465 = vadd.f32 %v164, %v463
    %v466 = vxor.u32 %v465, 2147483648
    %v467 = vmul.f32 %v466, 1.442695
    %v468 = vpow.pop %v467
    %v469 = vadd.f32 %v468, 1.0
    %v470 = vrcp.pop %v469
    %v471 = vmul.f32 1.0, %v470
    %v472 = vtanh.pop %v465
    %v474 = vrot.slane %v379, 7
    %v476 = vmul.f32 %v471, %v474
    %478 = vrot.lane.b32.xlu0 %v472, 64
    %v479 = vpop.permute.xlu0 %478
    %v481 = vmul.f32 %v471, %v479
    %483 = vrot.lane.b32.xlu0 %v481, 32
    %v484 = vpop.permute.xlu0 %483
    %v486 = vadd.f32 %v476, %v484
    %v487 = vtanh.pop %v486
    %489 = vrot.lane.b32.xlu0 %v487, 64
    %v490 = vpop.permute.xlu0 %489
    %v492 = vmul.f32 %v471, %v490
    %v494 = vrot.slane %v492, 2
    %495 = vrot.lane.b32.xlu0 %v494, 32
    %v496 = vpop.permute.xlu0 %495
    %v497 = vsel %vm173, %v496, 0
    %499 = vmatprep.subr.mxu0 0.0
    %500 = vmatpush1.msra.mxu0 0.0
    %501 = vmatprep.subr.mxu0 0.0
    %502 = vmatpush1.msra.mxu0 0.0
    %503 = vmatprep.subr.mxu0 0.0
    %504 = vmatpush1.msra.mxu0 0.0
    %505 = vmatprep.subr.mxu0 0.0
    %506 = vmatpush1.msra.mxu0 0.0
    %507 = vmatprep.subr.mxu0 0.0
    %508 = vmatpush1.msra.mxu0 0.0
    %509 = vmatprep.subr.mxu0 0.0
    %510 = vmatpush1.msra.mxu0 0.0
    %511 = vmatprep.subr.mxu0 0.0
    %512 = vmatpush1.msra.mxu0 0.0
    %513 = vmatprep.subr.mxu0 0.0
    %514 = vmatpush1.msra.mxu0 0.0
    %515 = vmatprep.subr.mxu0 0.0
    %516 = vmatpush1.msra.mxu0 0.0
    %517 = vmatprep.subr.mxu0 0.0
    %518 = vmatpush1.msra.mxu0 0.0
    %519 = vmatprep.subr.mxu0 0.0
    %520 = vmatpush1.msra.mxu0 0.0
    %521 = vmatprep.subr.mxu0 0.0
    %522 = vmatpush1.msra.mxu0 0.0
    %523 = vmatprep.subr.mxu0 0.0
    %524 = vmatpush1.msra.mxu0 %v170
    %525 = vmatprep.subr.mxu0 0.0
    %526 = vmatpush1.msra.mxu0 %v169
    %527 = vmatprep.subr.mxu0 0.0
    %528 = vmatpush1.msra.mxu0 %v168
    %529 = vmatprep.subr.mxu0 0.0
    %530 = vmatpush1.msra.mxu0 %v167
    %531 = vmatprep.subr.mxu0 0.0
    %532 = vmatpush2.msra.mxu0 0.0
    %533 = vmatprep.subr.mxu0 0.0
    %534 = vmatpush2.msra.mxu0 0.0
    %535 = vmatprep.subr.mxu0 0.0
    %536 = vmatpush2.msra.mxu0 0.0
    %537 = vmatprep.subr.mxu0 0.0
    %538 = vmatpush2.msra.mxu0 0.0
    %539 = vmatprep.subr.mxu0 0.0
    %540 = vmatpush2.msra.mxu0 0.0
    %541 = vmatprep.subr.mxu0 0.0
    %542 = vmatpush2.msra.mxu0 0.0
    %543 = vmatprep.subr.mxu0 0.0
    %544 = vmatpush2.msra.mxu0 0.0
    %545 = vmatprep.subr.mxu0 0.0
    %546 = vmatpush2.msra.mxu0 0.0
    %547 = vmatprep.subr.mxu0 0.0
    %548 = vmatpush2.msra.mxu0 0.0
    %549 = vmatprep.subr.mxu0 0.0
    %550 = vmatpush2.msra.mxu0 0.0
    %551 = vmatprep.subr.mxu0 0.0
    %552 = vmatpush2.msra.mxu0 0.0
    %553 = vmatprep.subr.mxu0 0.0
    %554 = vmatpush2.msra.mxu0 0.0
    %555 = vmatprep.subr.mxu0 0.0
    %556 = vmatpush2.msra.mxu0 0.0
    %557 = vmatprep.subr.mxu0 0.0
    %558 = vmatpush2.msra.mxu0 0.0
    %559 = vmatprep.subr.mxu0 0.0
    %560 = vmatpush2.msra.mxu0 0.0
    %561 = vmatprep.subr.mxu0 0.0
    %562 = vmatpush2.msra.mxu0 0.0
    %563 = vmatprep.mubr.f32.mxu0 0.0
    %564 = vmatmul.mubr.f32.gmra.mxu0 %v497
    %v565 = vpop.f32.mrf.mxu0
    %v566 = vadd.f32 0.0, %v565
    %v567 = vpop.f32.mrf.mxu0
    %568 = vdwg.mxu0
    %v570 = vrot.slane %v566, 5
    %v572 = vadd.f32 %v164, %v570
    %v573 = vxor.u32 %v572, 2147483648
    %v574 = vmul.f32 %v573, 1.442695
    %v575 = vpow.pop %v574
    %v576 = vadd.f32 %v575, 1.0
    %v577 = vrcp.pop %v576
    %v578 = vmul.f32 1.0, %v577
    %v579 = vtanh.pop %v572
    %v581 = vrot.slane %v486, 7
    %v583 = vmul.f32 %v578, %v581
    %585 = vrot.lane.b32.xlu0 %v579, 64
    %v586 = vpop.permute.xlu0 %585
    %v588 = vmul.f32 %v578, %v586
    %590 = vrot.lane.b32.xlu0 %v588, 32
    %v591 = vpop.permute.xlu0 %590
    %v593 = vadd.f32 %v583, %v591
    %v594 = vtanh.pop %v593
    %596 = vrot.lane.b32.xlu0 %v594, 64
    %v597 = vpop.permute.xlu0 %596
    %v599 = vmul.f32 %v578, %v597
    %v601 = vrot.slane %v599, 3
    %602 = vrot.lane.b32.xlu0 %v601, 32
    %v603 = vpop.permute.xlu0 %602
    %v604 = vsel %vm173, %v603, 0
    %606 = vmatprep.subr.mxu0 0.0
    %607 = vmatpush1.msra.mxu0 0.0
    %608 = vmatprep.subr.mxu0 0.0
    %609 = vmatpush1.msra.mxu0 0.0
    %610 = vmatprep.subr.mxu0 0.0
    %611 = vmatpush1.msra.mxu0 0.0
    %612 = vmatprep.subr.mxu0 0.0
    %613 = vmatpush1.msra.mxu0 0.0
    %614 = vmatprep.subr.mxu0 0.0
    %615 = vmatpush1.msra.mxu0 0.0
    %616 = vmatprep.subr.mxu0 0.0
    %617 = vmatpush1.msra.mxu0 0.0
    %618 = vmatprep.subr.mxu0 0.0
    %619 = vmatpush1.msra.mxu0 0.0
    %620 = vmatprep.subr.mxu0 0.0
    %621 = vmatpush1.msra.mxu0 0.0
    %622 = vmatprep.subr.mxu0 0.0
    %623 = vmatpush1.msra.mxu0 0.0
    %624 = vmatprep.subr.mxu0 0.0
    %625 = vmatpush1.msra.mxu0 0.0
    %626 = vmatprep.subr.mxu0 0.0
    %627 = vmatpush1.msra.mxu0 0.0
    %628 = vmatprep.subr.mxu0 0.0
    %629 = vmatpush1.msra.mxu0 0.0
    %630 = vmatprep.subr.mxu0 0.0
    %631 = vmatpush1.msra.mxu0 %v170
    %632 = vmatprep.subr.mxu0 0.0
    %633 = vmatpush1.msra.mxu0 %v169
    %634 = vmatprep.subr.mxu0 0.0
    %635 = vmatpush1.msra.mxu0 %v168
    %636 = vmatprep.subr.mxu0 0.0
    %637 = vmatpush1.msra.mxu0 %v167
    %638 = vmatprep.subr.mxu0 0.0
    %639 = vmatpush2.msra.mxu0 0.0
    %640 = vmatprep.subr.mxu0 0.0
    %641 = vmatpush2.msra.mxu0 0.0
    %642 = vmatprep.subr.mxu0 0.0
    %643 = vmatpush2.msra.mxu0 0.0
    %644 = vmatprep.subr.mxu0 0.0
    %645 = vmatpush2.msra.mxu0 0.0
    %646 = vmatprep.subr.mxu0 0.0
    %647 = vmatpush2.msra.mxu0 0.0
    %648 = vmatprep.subr.mxu0 0.0
    %649 = vmatpush2.msra.mxu0 0.0
    %650 = vmatprep.subr.mxu0 0.0
    %651 = vmatpush2.msra.mxu0 0.0
    %652 = vmatprep.subr.mxu0 0.0
    %653 = vmatpush2.msra.mxu0 0.0
    %654 = vmatprep.subr.mxu0 0.0
    %655 = vmatpush2.msra.mxu0 0.0
    %656 = vmatprep.subr.mxu0 0.0
    %657 = vmatpush2.msra.mxu0 0.0
    %658 = vmatprep.subr.mxu0 0.0
    %659 = vmatpush2.msra.mxu0 0.0
    %660 = vmatprep.subr.mxu0 0.0
    %661 = vmatpush2.msra.mxu0 0.0
    %662 = vmatprep.subr.mxu0 0.0
    %663 = vmatpush2.msra.mxu0 0.0
    %664 = vmatprep.subr.mxu0 0.0
    %665 = vmatpush2.msra.mxu0 0.0
    %666 = vmatprep.subr.mxu0 0.0
    %667 = vmatpush2.msra.mxu0 0.0
    %668 = vmatprep.subr.mxu0 0.0
    %669 = vmatpush2.msra.mxu0 0.0
    %670 = vmatprep.mubr.f32.mxu0 0.0
    %671 = vmatmul.mubr.f32.gmra.mxu0 %v604
    %v672 = vpop.f32.mrf.mxu0
    %v673 = vadd.f32 0.0, %v672
    %v674 = vpop.f32.mrf.mxu0
    %675 = vdwg.mxu0
    %v677 = vrot.slane %v673, 4
    %v679 = vadd.f32 %v164, %v677
    %v680 = vxor.u32 %v679, 2147483648
    %v681 = vmul.f32 %v680, 1.442695
    %v682 = vpow.pop %v681
    %v683 = vadd.f32 %v682, 1.0
    %v684 = vrcp.pop %v683
    %v685 = vmul.f32 1.0, %v684
    %v686 = vtanh.pop %v679
    %v688 = vrot.slane %v593, 7
    %v690 = vmul.f32 %v685, %v688
    %692 = vrot.lane.b32.xlu0 %v686, 64
    %v693 = vpop.permute.xlu0 %692
    %v695 = vmul.f32 %v685, %v693
    %697 = vrot.lane.b32.xlu0 %v695, 32
    %v698 = vpop.permute.xlu0 %697
    %v700 = vadd.f32 %v690, %v698
    %v701 = vtanh.pop %v700
    %703 = vrot.lane.b32.xlu0 %v701, 64
    %v704 = vpop.permute.xlu0 %703
    %v706 = vmul.f32 %v685, %v704
    %v708 = vrot.slane %v706, 4
    %709 = vrot.lane.b32.xlu0 %v708, 32
    %v710 = vpop.permute.xlu0 %709
    %v711 = vsel %vm173, %v710, 0
    %713 = vmatprep.subr.mxu0 0.0
    %714 = vmatpush1.msra.mxu0 0.0
    %715 = vmatprep.subr.mxu0 0.0
    %716 = vmatpush1.msra.mxu0 0.0
    %717 = vmatprep.subr.mxu0 0.0
    %718 = vmatpush1.msra.mxu0 0.0
    %719 = vmatprep.subr.mxu0 0.0
    %720 = vmatpush1.msra.mxu0 0.0
    %721 = vmatprep.subr.mxu0 0.0
    %722 = vmatpush1.msra.mxu0 0.0
    %723 = vmatprep.subr.mxu0 0.0
    %724 = vmatpush1.msra.mxu0 0.0
    %725 = vmatprep.subr.mxu0 0.0
    %726 = vmatpush1.msra.mxu0 0.0
    %727 = vmatprep.subr.mxu0 0.0
    %728 = vmatpush1.msra.mxu0 0.0
    %729 = vmatprep.subr.mxu0 0.0
    %730 = vmatpush1.msra.mxu0 0.0
    %731 = vmatprep.subr.mxu0 0.0
    %732 = vmatpush1.msra.mxu0 0.0
    %733 = vmatprep.subr.mxu0 0.0
    %734 = vmatpush1.msra.mxu0 0.0
    %735 = vmatprep.subr.mxu0 0.0
    %736 = vmatpush1.msra.mxu0 0.0
    %737 = vmatprep.subr.mxu0 0.0
    %738 = vmatpush1.msra.mxu0 %v170
    %739 = vmatprep.subr.mxu0 0.0
    %740 = vmatpush1.msra.mxu0 %v169
    %741 = vmatprep.subr.mxu0 0.0
    %742 = vmatpush1.msra.mxu0 %v168
    %743 = vmatprep.subr.mxu0 0.0
    %744 = vmatpush1.msra.mxu0 %v167
    %745 = vmatprep.subr.mxu0 0.0
    %746 = vmatpush2.msra.mxu0 0.0
    %747 = vmatprep.subr.mxu0 0.0
    %748 = vmatpush2.msra.mxu0 0.0
    %749 = vmatprep.subr.mxu0 0.0
    %750 = vmatpush2.msra.mxu0 0.0
    %751 = vmatprep.subr.mxu0 0.0
    %752 = vmatpush2.msra.mxu0 0.0
    %753 = vmatprep.subr.mxu0 0.0
    %754 = vmatpush2.msra.mxu0 0.0
    %755 = vmatprep.subr.mxu0 0.0
    %756 = vmatpush2.msra.mxu0 0.0
    %757 = vmatprep.subr.mxu0 0.0
    %758 = vmatpush2.msra.mxu0 0.0
    %759 = vmatprep.subr.mxu0 0.0
    %760 = vmatpush2.msra.mxu0 0.0
    %761 = vmatprep.subr.mxu0 0.0
    %762 = vmatpush2.msra.mxu0 0.0
    %763 = vmatprep.subr.mxu0 0.0
    %764 = vmatpush2.msra.mxu0 0.0
    %765 = vmatprep.subr.mxu0 0.0
    %766 = vmatpush2.msra.mxu0 0.0
    %767 = vmatprep.subr.mxu0 0.0
    %768 = vmatpush2.msra.mxu0 0.0
    %769 = vmatprep.subr.mxu0 0.0
    %770 = vmatpush2.msra.mxu0 0.0
    %771 = vmatprep.subr.mxu0 0.0
    %772 = vmatpush2.msra.mxu0 0.0
    %773 = vmatprep.subr.mxu0 0.0
    %774 = vmatpush2.msra.mxu0 0.0
    %775 = vmatprep.subr.mxu0 0.0
    %776 = vmatpush2.msra.mxu0 0.0
    %777 = vmatprep.mubr.f32.mxu0 0.0
    %778 = vmatmul.mubr.f32.gmra.mxu0 %v711
    %v779 = vpop.f32.mrf.mxu0
    %v780 = vadd.f32 0.0, %v779
    %v781 = vpop.f32.mrf.mxu0
    %782 = vdwg.mxu0
    %v784 = vrot.slane %v780, 3
    %v786 = vadd.f32 %v164, %v784
    %v787 = vxor.u32 %v786, 2147483648
    %v788 = vmul.f32 %v787, 1.442695
    %v789 = vpow.pop %v788
    %v790 = vadd.f32 %v789, 1.0
    %v791 = vrcp.pop %v790
    %v792 = vmul.f32 1.0, %v791
    %v793 = vtanh.pop %v786
    %v795 = vrot.slane %v700, 7
    %v797 = vmul.f32 %v792, %v795
    %799 = vrot.lane.b32.xlu0 %v793, 64
    %v800 = vpop.permute.xlu0 %799
    %v802 = vmul.f32 %v792, %v800
    %804 = vrot.lane.b32.xlu0 %v802, 32
    %v805 = vpop.permute.xlu0 %804
    %v807 = vadd.f32 %v797, %v805
    %v808 = vtanh.pop %v807
    %810 = vrot.lane.b32.xlu0 %v808, 64
    %v811 = vpop.permute.xlu0 %810
    %v813 = vmul.f32 %v792, %v811
    %v815 = vrot.slane %v813, 5
    %816 = vrot.lane.b32.xlu0 %v815, 32
    %v817 = vpop.permute.xlu0 %816
    %v818 = vsel %vm173, %v817, 0
    %820 = vmatprep.subr.mxu0 0.0
    %821 = vmatpush1.msra.mxu0 0.0
    %822 = vmatprep.subr.mxu0 0.0
    %823 = vmatpush1.msra.mxu0 0.0
    %824 = vmatprep.subr.mxu0 0.0
    %825 = vmatpush1.msra.mxu0 0.0
    %826 = vmatprep.subr.mxu0 0.0
    %827 = vmatpush1.msra.mxu0 0.0
    %828 = vmatprep.subr.mxu0 0.0
    %829 = vmatpush1.msra.mxu0 0.0
    %830 = vmatprep.subr.mxu0 0.0
    %831 = vmatpush1.msra.mxu0 0.0
    %832 = vmatprep.subr.mxu0 0.0
    %833 = vmatpush1.msra.mxu0 0.0
    %834 = vmatprep.subr.mxu0 0.0
    %835 = vmatpush1.msra.mxu0 0.0
    %836 = vmatprep.subr.mxu0 0.0
    %837 = vmatpush1.msra.mxu0 0.0
    %838 = vmatprep.subr.mxu0 0.0
    %839 = vmatpush1.msra.mxu0 0.0
    %840 = vmatprep.subr.mxu0 0.0
    %841 = vmatpush1.msra.mxu0 0.0
    %842 = vmatprep.subr.mxu0 0.0
    %843 = vmatpush1.msra.mxu0 0.0
    %844 = vmatprep.subr.mxu0 0.0
    %845 = vmatpush1.msra.mxu0 %v170
    %846 = vmatprep.subr.mxu0 0.0
    %847 = vmatpush1.msra.mxu0 %v169
    %848 = vmatprep.subr.mxu0 0.0
    %849 = vmatpush1.msra.mxu0 %v168
    %850 = vmatprep.subr.mxu0 0.0
    %851 = vmatpush1.msra.mxu0 %v167
    %852 = vmatprep.subr.mxu0 0.0
    %853 = vmatpush2.msra.mxu0 0.0
    %854 = vmatprep.subr.mxu0 0.0
    %855 = vmatpush2.msra.mxu0 0.0
    %856 = vmatprep.subr.mxu0 0.0
    %857 = vmatpush2.msra.mxu0 0.0
    %858 = vmatprep.subr.mxu0 0.0
    %859 = vmatpush2.msra.mxu0 0.0
    %860 = vmatprep.subr.mxu0 0.0
    %861 = vmatpush2.msra.mxu0 0.0
    %862 = vmatprep.subr.mxu0 0.0
    %863 = vmatpush2.msra.mxu0 0.0
    %864 = vmatprep.subr.mxu0 0.0
    %865 = vmatpush2.msra.mxu0 0.0
    %866 = vmatprep.subr.mxu0 0.0
    %867 = vmatpush2.msra.mxu0 0.0
    %868 = vmatprep.subr.mxu0 0.0
    %869 = vmatpush2.msra.mxu0 0.0
    %870 = vmatprep.subr.mxu0 0.0
    %871 = vmatpush2.msra.mxu0 0.0
    %872 = vmatprep.subr.mxu0 0.0
    %873 = vmatpush2.msra.mxu0 0.0
    %874 = vmatprep.subr.mxu0 0.0
    %875 = vmatpush2.msra.mxu0 0.0
    %876 = vmatprep.subr.mxu0 0.0
    %877 = vmatpush2.msra.mxu0 0.0
    %878 = vmatprep.subr.mxu0 0.0
    %879 = vmatpush2.msra.mxu0 0.0
    %880 = vmatprep.subr.mxu0 0.0
    %881 = vmatpush2.msra.mxu0 0.0
    %882 = vmatprep.subr.mxu0 0.0
    %883 = vmatpush2.msra.mxu0 0.0
    %884 = vmatprep.mubr.f32.mxu0 0.0
    %885 = vmatmul.mubr.f32.gmra.mxu0 %v818
    %v886 = vpop.f32.mrf.mxu0
    %v887 = vadd.f32 0.0, %v886
    %v888 = vpop.f32.mrf.mxu0
    %889 = vdwg.mxu0
    %v891 = vrot.slane %v887, 2
    %v893 = vadd.f32 %v164, %v891
    %v894 = vxor.u32 %v893, 2147483648
    %v895 = vmul.f32 %v894, 1.442695
    %v896 = vpow.pop %v895
    %v897 = vadd.f32 %v896, 1.0
    %v898 = vrcp.pop %v897
    %v899 = vmul.f32 1.0, %v898
    %v900 = vtanh.pop %v893
    %v902 = vrot.slane %v807, 7
    %v904 = vmul.f32 %v899, %v902
    %906 = vrot.lane.b32.xlu0 %v900, 64
    %v907 = vpop.permute.xlu0 %906
    %v909 = vmul.f32 %v899, %v907
    %911 = vrot.lane.b32.xlu0 %v909, 32
    %v912 = vpop.permute.xlu0 %911
    %v914 = vadd.f32 %v904, %v912
    %v915 = vtanh.pop %v914
    %917 = vrot.lane.b32.xlu0 %v915, 64
    %v918 = vpop.permute.xlu0 %917
    %v920 = vmul.f32 %v899, %v918
    %v922 = vrot.slane %v920, 6
    %923 = vrot.lane.b32.xlu0 %v922, 32
    %v924 = vpop.permute.xlu0 %923
    %v925 = vsel %vm173, %v924, 0
    %927 = vmatprep.subr.mxu0 0.0
    %928 = vmatpush1.msra.mxu0 0.0
    %929 = vmatprep.subr.mxu0 0.0
    %930 = vmatpush1.msra.mxu0 0.0
    %931 = vmatprep.subr.mxu0 0.0
    %932 = vmatpush1.msra.mxu0 0.0
    %933 = vmatprep.subr.mxu0 0.0
    %934 = vmatpush1.msra.mxu0 0.0
    %935 = vmatprep.subr.mxu0 0.0
    %936 = vmatpush1.msra.mxu0 0.0
    %937 = vmatprep.subr.mxu0 0.0
    %938 = vmatpush1.msra.mxu0 0.0
    %939 = vmatprep.subr.mxu0 0.0
    %940 = vmatpush1.msra.mxu0 0.0
    %941 = vmatprep.subr.mxu0 0.0
    %942 = vmatpush1.msra.mxu0 0.0
    %943 = vmatprep.subr.mxu0 0.0
    %944 = vmatpush1.msra.mxu0 0.0
    %945 = vmatprep.subr.mxu0 0.0
    %946 = vmatpush1.msra.mxu0 0.0
    %947 = vmatprep.subr.mxu0 0.0
    %948 = vmatpush1.msra.mxu0 0.0
    %949 = vmatprep.subr.mxu0 0.0
    %950 = vmatpush1.msra.mxu0 0.0
    %951 = vmatprep.subr.mxu0 0.0
    %952 = vmatpush1.msra.mxu0 %v170
    %953 = vmatprep.subr.mxu0 0.0
    %954 = vmatpush1.msra.mxu0 %v169
    %955 = vmatprep.subr.mxu0 0.0
    %956 = vmatpush1.msra.mxu0 %v168
    %957 = vmatprep.subr.mxu0 0.0
    %958 = vmatpush1.msra.mxu0 %v167
    %959 = vmatprep.subr.mxu0 0.0
    %960 = vmatpush2.msra.mxu0 0.0
    %961 = vmatprep.subr.mxu0 0.0
    %962 = vmatpush2.msra.mxu0 0.0
    %963 = vmatprep.subr.mxu0 0.0
    %964 = vmatpush2.msra.mxu0 0.0
    %965 = vmatprep.subr.mxu0 0.0
    %966 = vmatpush2.msra.mxu0 0.0
    %967 = vmatprep.subr.mxu0 0.0
    %968 = vmatpush2.msra.mxu0 0.0
    %969 = vmatprep.subr.mxu0 0.0
    %970 = vmatpush2.msra.mxu0 0.0
    %971 = vmatprep.subr.mxu0 0.0
    %972 = vmatpush2.msra.mxu0 0.0
    %973 = vmatprep.subr.mxu0 0.0
    %974 = vmatpush2.msra.mxu0 0.0
    %975 = vmatprep.subr.mxu0 0.0
    %976 = vmatpush2.msra.mxu0 0.0
    %977 = vmatprep.subr.mxu0 0.0
    %978 = vmatpush2.msra.mxu0 0.0
    %979 = vmatprep.subr.mxu0 0.0
    %980 = vmatpush2.msra.mxu0 0.0
    %981 = vmatprep.subr.mxu0 0.0
    %982 = vmatpush2.msra.mxu0 0.0
    %983 = vmatprep.subr.mxu0 0.0
    %984 = vmatpush2.msra.mxu0 0.0
    %985 = vmatprep.subr.mxu0 0.0
    %986 = vmatpush2.msra.mxu0 0.0
    %987 = vmatprep.subr.mxu0 0.0
    %988 = vmatpush2.msra.mxu0 0.0
    %989 = vmatprep.subr.mxu0 0.0
    %990 = vmatpush2.msra.mxu0 0.0
    %991 = vmatprep.mubr.f32.mxu0 0.0
    %992 = vmatmul.mubr.f32.gmra.mxu0 %v925
    %v993 = vpop.f32.mrf.mxu0
    %v994 = vadd.f32 0.0, %v993
    %v995 = vpop.f32.mrf.mxu0
    %996 = vdwg.mxu0
    %v998 = vrot.slane %v994, 1
    %v1000 = vadd.f32 %v164, %v998
    %v1001 = vxor.u32 %v1000, 2147483648
    %v1002 = vmul.f32 %v1001, 1.442695
    %v1003 = vpow.pop %v1002
    %v1004 = vadd.f32 %v1003, 1.0
    %v1005 = vrcp.pop %v1004
    %v1006 = vmul.f32 1.0, %v1005
    %v1007 = vtanh.pop %v1000
    %v1009 = vrot.slane %v914, 7
    %v1011 = vmul.f32 %v1006, %v1009
    %1013 = vrot.lane.b32.xlu0 %v1007, 64
    %v1014 = vpop.permute.xlu0 %1013
    %v1016 = vmul.f32 %v1006, %v1014
    %1018 = vrot.lane.b32.xlu0 %v1016, 32
    %v1019 = vpop.permute.xlu0 %1018
    %v1021 = vadd.f32 %v1011, %v1019
    %v1022 = vtanh.pop %v1021
    %1024 = vrot.lane.b32.xlu0 %v1022, 64
    %v1025 = vpop.permute.xlu0 %1024
    %v1027 = vmul.f32 %v1006, %v1025
    %vm1028 = vcmask 1040384
    %v1029 = vsel %vm1028, %v279, %v385
    %vm1030 = vcmask 1041408
    %v1031 = vsel %vm1030, %v1029, %v492
    %vm1032 = vcmask 1042432
    %v1033 = vsel %vm1032, %v1031, %v599
    %vm1034 = vcmask 1043456
    %v1035 = vsel %vm1034, %v1033, %v706
    %vm1036 = vcmask 1044480
    %v1037 = vsel %vm1036, %v1035, %v813
    %vm1038 = vcmask 1045504
    %v1039 = vsel %vm1038, %v1037, %v920
    %vm1040 = vcmask 1046528
    %v1041 = vsel %vm1040, %v1039, %v1027
    %v1042 = vld [vmem:[#allocation8] sm:$0xff]
    %v1043 = vld [vmem:[#allocation8 + $0x8] sm:$0xff]
    %v1044 = vld [vmem:[#allocation8 + $0x10] sm:$0xff]
    %v1045 = vld [vmem:[#allocation8 + $0x18] sm:$0xff]
    %v1046 = vld [vmem:[%s7] sm:$0x1]
    %v1048 = vlaneseq
    %v1049 = vshrl.u32 %v1048, 7
    %v1050 = vsub.s32 0, %v1049
    %v1051 = vrot.slane %v1046, %v1050
    %1054 = vrot.lane.b32.xlu0 %v1041, 32
    %v1055 = vpop.permute.xlu0 %1054
    %v1056 = vsel %vm173, %v1055, 0
    %1058 = vmatprep.subr.mxu0 0.0
    %1059 = vmatpush1.msra.mxu0 0.0
    %1060 = vmatprep.subr.mxu0 0.0
    %1061 = vmatpush1.msra.mxu0 0.0
    %1062 = vmatprep.subr.mxu0 0.0
    %1063 = vmatpush1.msra.mxu0 0.0
    %1064 = vmatprep.subr.mxu0 0.0
    %1065 = vmatpush1.msra.mxu0 0.0
    %1066 = vmatprep.subr.mxu0 0.0
    %1067 = vmatpush1.msra.mxu0 0.0
    %1068 = vmatprep.subr.mxu0 0.0
    %1069 = vmatpush1.msra.mxu0 0.0
    %1070 = vmatprep.subr.mxu0 0.0
    %1071 = vmatpush1.msra.mxu0 0.0
    %1072 = vmatprep.subr.mxu0 0.0
    %1073 = vmatpush1.msra.mxu0 0.0
    %1074 = vmatprep.subr.mxu0 0.0
    %1075 = vmatpush1.msra.mxu0 0.0
    %1076 = vmatprep.subr.mxu0 0.0
    %1077 = vmatpush1.msra.mxu0 0.0
    %1078 = vmatprep.subr.mxu0 0.0
    %1079 = vmatpush1.msra.mxu0 0.0
    %1080 = vmatprep.subr.mxu0 0.0
    %1081 = vmatpush1.msra.mxu0 0.0
    %1082 = vmatprep.subr.mxu0 0.0
    %1083 = vmatpush1.msra.mxu0 %v1045
    %1084 = vmatprep.subr.mxu0 0.0
    %1085 = vmatpush1.msra.mxu0 %v1044
    %1086 = vmatprep.subr.mxu0 0.0
    %1087 = vmatpush1.msra.mxu0 %v1043
    %1088 = vmatprep.subr.mxu0 0.0
    %1089 = vmatpush1.msra.mxu0 %v1042
    %1090 = vmatprep.subr.mxu0 0.0
    %1091 = vmatpush2.msra.mxu0 0.0
    %1092 = vmatprep.subr.mxu0 0.0
    %1093 = vmatpush2.msra.mxu0 0.0
    %1094 = vmatprep.subr.mxu0 0.0
    %1095 = vmatpush2.msra.mxu0 0.0
    %1096 = vmatprep.subr.mxu0 0.0
    %1097 = vmatpush2.msra.mxu0 0.0
    %1098 = vmatprep.subr.mxu0 0.0
    %1099 = vmatpush2.msra.mxu0 0.0
    %1100 = vmatprep.subr.mxu0 0.0
    %1101 = vmatpush2.msra.mxu0 0.0
    %1102 = vmatprep.subr.mxu0 0.0
    %1103 = vmatpush2.msra.mxu0 0.0
    %1104 = vmatprep.subr.mxu0 0.0
    %1105 = vmatpush2.msra.mxu0 0.0
    %1106 = vmatprep.subr.mxu0 0.0
    %1107 = vmatpush2.msra.mxu0 0.0
    %1108 = vmatprep.subr.mxu0 0.0
    %1109 = vmatpush2.msra.mxu0 0.0
    %1110 = vmatprep.subr.mxu0 0.0
    %1111 = vmatpush2.msra.mxu0 0.0
    %1112 = vmatprep.subr.mxu0 0.0
    %1113 = vmatpush2.msra.mxu0 0.0
    %1114 = vmatprep.subr.mxu0 0.0
    %1115 = vmatpush2.msra.mxu0 0.0
    %1116 = vmatprep.subr.mxu0 0.0
    %1117 = vmatpush2.msra.mxu0 0.0
    %1118 = vmatprep.subr.mxu0 0.0
    %1119 = vmatpush2.msra.mxu0 0.0
    %1120 = vmatprep.subr.mxu0 0.0
    %1121 = vmatpush2.msra.mxu0 0.0
    %1122 = vmatprep.mubr.f32.mxu0 0.0
    %1123 = vmatmul.mubr.f32.gmra.mxu0 %v1056
    %v1124 = vpop.f32.mrf.mxu0
    %v1125 = vadd.f32 %v1051, %v1124
    %v1126 = vpop.f32.mrf.mxu0
    %1127 = vdwg.mxu0
    %1128 = vst [vmem:[#allocation10] sm:$0xff] %v1125
    // Predicated region
    $region50: #{tpu_custom_call.1} parent=1 // pred_check
      _
    $region51: #{tpu_custom_call.1} parent=1 // pred_check_branch
      %1130 = sbr.rel (0) target = $region53
    $region52: #{tpu_custom_call.1} parent=1 // pred_region
      %s1132 = ssub.s32 128, 128
      %1133 = vsyncadd [#allocation4], %s1132
      %s1135 = sshll.u32 [#allocation10], 4
      %s1136 = int_to_ptr.vmem [resolvable:$true] %s1135
      %1138 = dma.vmem_to_hbm [thread:$0]  %s1136, 128, %s8, [#allocation4]
    $region53: #{tpu_custom_call.1} parent=1 // pred_fallthru
      _
    // Predicated region
    $region54: #{tpu_custom_call.1} parent=1 // pred_check
      _
    $region55: #{tpu_custom_call.1} parent=1 // pred_check_branch
      %1140 = sbr.rel (0) target = $region57
    $region56: #{tpu_custom_call.1} parent=1 // pred_region
      %1141 = dma.done [#allocation4], 128
    $region57: #{tpu_custom_call.1} parent=1 // pred_fallthru
      _
    %1142 = vsyncpa [#allocation3], 1
    %1143 = vsyncpa [#allocation6], 1
    %1144 = vsyncpa [#allocation9], 1
    %1145 = vsyncpa [#allocation4], 1

</llo_original>
